<compile_context>
chip_gen: v7x
topology: tpu7x:2x2x1
jax: 0.10.0
libtpu: 0.0.40
codegen_flags: <defaults>
</compile_context>

<pallas_src>
import jax
import jax.numpy as jnp
from jax.experimental import pallas as pl
from jax.experimental.pallas import tpu as pltpu


# ---------------------------------------------------------------------------
# Tile picking: largest t <= target with N % t == 0 and (t % mult == 0 or t == N).
# ---------------------------------------------------------------------------
def _pick_tile(n, target, mult):
    t = min(target, n)
    while t > 1:
        if n % t == 0 and (t == n or t % mult == 0):
            return t
        t -= 1
    return n


# ---------------------------------------------------------------------------
# Kernel 1: pairwise squared distance  dist[b, i, j] = ||x_i - x_j||^2
#           row-tiled over i, lane-dense [TM, N] output.
# ---------------------------------------------------------------------------
def _sqdist_kernel(xq_ref, xt_ref, dist_ref):
    xq = xq_ref[0]                                                  # [TM, 3]
    xt = xt_ref[0]                                                  # [3, N]
    dot = jax.lax.dot_general(xq, xt, (((1,), (0,)), ((), ())),
                              preferred_element_type=jnp.float32)   # [TM, N]
    sq_q = jnp.sum(xq * xq, axis=-1, keepdims=True)                 # [TM, 1]
    sq_all = jnp.sum(xt * xt, axis=0, keepdims=True)                # [1, N] (sublane reduce)
    dist_ref[0] = sq_q + sq_all - 2.0 * dot


def pairwise_sqdist(vertices, xyzT, tm):
    B, N, _ = vertices.shape
    return pl.pallas_call(
        _sqdist_kernel,
        out_shape=jax.ShapeDtypeStruct((B, N, N), jnp.float32),
        grid=(B, N // tm),
        in_specs=[
            pl.BlockSpec((1, tm, 3), lambda b, i: (b, i, 0)),
            pl.BlockSpec((1, 3, N), lambda b, i: (b, 0, 0)),
        ],
        out_specs=pl.BlockSpec((1, tm, N), lambda b, i: (b, i, 0)),
        compiler_params=pltpu.CompilerParams(
            dimension_semantics=("parallel", "parallel")),
    )(vertices, xyzT)


# ---------------------------------------------------------------------------
# Parameter packing: fold MLP layer 1 over the concat [v0, v, v0-v, ||v0-v||]
# and pack everything into two small slabs (avoids 6 tiny padded operands).
#   w_slab [10,16] = [A^T | Bm^T | w2^T]  with A = w1[0:3]+w1[6:9], Bm = w1[3:6]-w1[6:9]
#   b_slab [10,5]  columns: wn (w1[9]), b1, b2, w3, b3(broadcast)
# ---------------------------------------------------------------------------
def pack_params(params):
    w1, b1, w2, b2, w3, b3 = params
    a = w1[0:3] + w1[6:9]
    bm = w1[3:6] - w1[6:9]
    wn = w1[9]
    w_slab = jnp.concatenate([a, bm, w2], axis=0).T.astype(jnp.float32)      # [10, 16]
    b_slab = jnp.stack(
        [wn, b1[0], b2[0], w3[:, 0],
         jnp.full((10,), b3[0, 0], dtype=jnp.float32)], axis=1
    ).astype(jnp.float32)                                                    # [10, 5]
    return w_slab, b_slab


# ---------------------------------------------------------------------------
# Kernel 2: fused folded-MLP (10->10->10->1, LeakyReLU 0.2) + in-kernel
#           "gather" of F via a scatter matrix + weighted sum over k neighbors.
#           MLP intermediates are [10, TM] (points lane-dense); no concats/reshapes.
# ---------------------------------------------------------------------------
def _knn_fuse_kernel(v0t_ref, vgt_ref, idxt_ref, f_ref, w_ref, b_ref, out_ref):
    x0 = v0t_ref[0]                                                  # [3, TM]
    vgt = vgt_ref[0]                                                 # [k, 3, TM]
    idxt = idxt_ref[0]                                               # [k, TM] int32
    f = f_ref[0]                                                     # [N, C]
    w = w_ref[...]                                                   # [10, 16]
    bb = b_ref[...]                                                  # [10, 5]

    at, bmt, w2t = w[:, 0:3], w[:, 3:6], w[:, 6:16]
    wn_c, b1_c, b2_c, w3_c = bb[:, 0:1], bb[:, 1:2], bb[:, 2:3], bb[:, 3:4]
    b3_s = bb[0:1, 4:5]

    k, _, tm = vgt.shape
    n = f.shape[0]

    # j-independent part of the folded first layer:  A^T @ v0 + b1
    h0 = jax.lax.dot_general(at, x0, (((1,), (0,)), ((), ())),
                             preferred_element_type=jnp.float32) + b1_c      # [10, TM]

    row_ids = jax.lax.broadcasted_iota(jnp.int32, (n, tm), 0)
    w_t = jnp.zeros((n, tm), jnp.float32)          # scatter matrix W^T[m, i]

    for j in range(k):                              # k is small & static -> unrolled
        xv = vgt[j]                                 # [3, TM]
        d = x0 - xv
        nrm = jnp.sqrt(jnp.sum(d * d, axis=0, keepdims=True))                # [1, TM]
        h = h0 + jax.lax.dot_general(bmt, xv, (((1,), (0,)), ((), ())),
                                     preferred_element_type=jnp.float32)
        h = h + wn_c * nrm
        h = jnp.where(h > 0, h, 0.2 * h)            # LeakyReLU(0.2)
        h = jax.lax.dot_general(w2t, h, (((1,), (0,)), ((), ())),
                                preferred_element_type=jnp.float32) + b2_c
        h = jnp.where(h > 0, h, 0.2 * h)
        s = jnp.sum(w3_c * h, axis=0, keepdims=True) + b3_s                  # [1, TM]
        ij = idxt[j:j + 1, :]                                                # [1, TM]
        w_t = w_t + jnp.where(row_ids == ij, s, 0.0)

    # out[i, c] = sum_m W^T[m, i] * F[m, c]  -> [TM, C], lane-dense (C on lanes)
    out_ref[0] = jax.lax.dot_general(
        w_t, f, (((0,), (0,)), ((), ())),
        preferred_element_type=jnp.float32).astype(out_ref.dtype)


def knn_fuse(v0T, vgT, idxT, F, w_slab, b_slab, tm):
    B, _, N = v0T.shape
    k = vgT.shape[1]
    C = F.shape[-1]
    return pl.pallas_call(
        _knn_fuse_kernel,
        out_shape=jax.ShapeDtypeStruct((B, N, C), jnp.float32),
        grid=(B, N // tm),
        in_specs=[
            pl.BlockSpec((1, 3, tm), lambda b, i: (b, 0, i)),
            pl.BlockSpec((1, k, 3, tm), lambda b, i: (b, 0, 0, i)),
            pl.BlockSpec((1, k, tm), lambda b, i: (b, 0, i)),
            pl.BlockSpec((1, N, C), lambda b, i: (b, 0, 0)),
            pl.BlockSpec((10, 16), lambda b, i: (0, 0)),
            pl.BlockSpec((10, 5), lambda b, i: (0, 0)),
        ],
        out_specs=pl.BlockSpec((1, tm, C), lambda b, i: (b, i, 0)),
        compiler_params=pltpu.CompilerParams(
            dimension_semantics=("parallel", "parallel")),
    )(v0T, vgT, idxT, F, w_slab, b_slab)


# ---------------------------------------------------------------------------
# Full forward.  Glue ops are tiny: top-k + a [B,N,k,3] vertex gather; the
# expensive [B,N,k,C] feature gather never touches HBM (fused in kernel 2).
# ---------------------------------------------------------------------------
def knn_dist_raw_forward(F, vertices, params, k, row_tile=256):
    B, N, _ = vertices.shape
    F = F.astype(jnp.float32)
    vertices = vertices.astype(jnp.float32)
    w_slab, b_slab = pack_params(params)

    xyzT = jnp.transpose(vertices, (0, 2, 1))               # [B, 3, N] (tiny)
    tm1 = _pick_tile(N, row_tile, 8)
    dist = pairwise_sqdist(vertices, xyzT, tm1)             # [B, N, N]

    # dist is symmetric, so top-k over the last axis equals
    # torch.topk(dist, k, dim=1, largest=False).indices.transpose(1, 2) up to tie order.
    # TODO(synk): top-k has no clean Pallas primitive; done with jax.lax.top_k here.
    idx = jax.lax.top_k(-dist, k)[1].astype(jnp.int32)      # [B, N, k]

    vg = jax.vmap(lambda p, i: p[i])(vertices, idx)         # [B, N, k, 3] (tiny)
    v0T = jnp.transpose(vg[:, :, 0, :], (0, 2, 1))          # [B, 3, N]
    vgT = jnp.transpose(vg, (0, 2, 3, 1))                   # [B, k, 3, N]
    idxT = jnp.transpose(idx, (0, 2, 1))                    # [B, k, N]

    tm2 = _pick_tile(N, row_tile, 128)
    out = knn_fuse(v0T, vgT, idxT, F, w_slab, b_slab, tm2)  # [B, N, C]
    return out, dist, idx


# ---------------------------------------------------------------------------
# Pure-JAX references (for correctness checks of the Pallas kernels).
# ---------------------------------------------------------------------------
def _ref_sqdist(x):
    d = -2.0 * jnp.einsum("bnd,bmd->bnm", x, x)
    sq = jnp.sum(x * x, axis=-1)
    return d + sq[:, :, None] + sq[:, None, :]


def _ref_from_idx(F, vertices, params, idx):
    w1, b1, w2, b2, w3, b3 = params
    gather = jax.vmap(lambda p, i: p[i])
    Fg = gather(F, idx)                                     # [B, N, k, C]
    vg = gather(vertices, idx)                              # [B, N, k, 3]
    v0 = jnp.broadcast_to(vg[:, :, 0:1, :], vg.shape)
    d = v0 - vg
    nrm = jnp.linalg.norm(d, axis=-1, keepdims=True)
    feat = jnp.concatenate([v0, vg, d, nrm], axis=-1)
    h = jax.nn.leaky_relu(feat @ w1 + b1[0], 0.2)
    h = jax.nn.leaky_relu(h @ w2 + b2[0], 0.2)
    s = h @ w3 + b3[0]
    return jnp.sum(s * Fg, axis=2)


if __name__ == "__main__":
    B, N, C, K = 2, 16, 8, 4

    key = jax.random.PRNGKey(0)
    kF, kV, k1, k2, k3, k4, k5, k6 = jax.random.split(key, 8)

    F = jax.random.normal(kF, (B, N, C), dtype=jnp.float32)
    vertices = jax.random.normal(kV, (B, N, 3), dtype=jnp.float32)

    # Deterministic synthetic parameters for the MLP R: 10 -> 10 -> 10 -> 1
    # (stored in x @ W + b convention, shapes (in, out) / (1, out)).
    params = (
        0.3 * jax.random.normal(k1, (10, 10), dtype=jnp.float32),
        0.1 * jax.random.normal(k2, (1, 10), dtype=jnp.float32),
        0.3 * jax.random.normal(k3, (10, 10), dtype=jnp.float32),
        0.1 * jax.random.normal(k4, (1, 10), dtype=jnp.float32),
        0.3 * jax.random.normal(k5, (10, 1), dtype=jnp.float32),
        0.1 * jax.random.normal(k6, (1, 1), dtype=jnp.float32),
    )

    out, dist, idx = knn_dist_raw_forward(F, vertices, params, K)
    out = jax.block_until_ready(out)

    # Sanity checks against pure-JAX references (same neighbor indices).
    dist_ref = _ref_sqdist(vertices)
    assert jnp.allclose(dist, dist_ref, atol=1e-3, rtol=1e-3), "dist kernel mismatch"
    out_ref = _ref_from_idx(F, vertices, params, idx)
    assert out.shape == (B, N, C)
    assert jnp.allclose(out, out_ref, atol=1e-3, rtol=1e-3), "fused kernel mismatch"

    print("KERNEL_OK")
</pallas_src>

<mosaic_0001>
module attributes {stable_mosaic.version = 11 : i64} {
  func.func @_sqdist_kernel(%arg0: i32, %arg1: i32, %arg2: memref<1x16x3xf32, #tpu.memory_space<vmem>>, %arg3: memref<1x3x16xf32, #tpu.memory_space<vmem>>, %arg4: memref<1x16x16xf32, #tpu.memory_space<vmem>>) attributes {dimension_semantics = [#tpu.dimension_semantics<parallel>, #tpu.dimension_semantics<parallel>], iteration_bounds = array<i64: 2, 1>, scalar_prefetch = 0 : i64, scratch_operands = 0 : i64, tpu.core_type = #tpu.core_type<tc>, window_params = [{transform_indices = @transform_0, window_bounds = array<i64: 1, 16, 3>}, {transform_indices = @transform_1, window_bounds = array<i64: 1, 3, 16>}, {transform_indices = @transform_2, window_bounds = array<i64: 1, 16, 16>}]} {
    %c0 = arith.constant 0 : index
    %c0_0 = arith.constant 0 : index
    %c0_1 = arith.constant 0 : index
    %0 = vector.load %arg2[%c0, %c0_0, %c0_1] : memref<1x16x3xf32, #tpu.memory_space<vmem>>, vector<1x16x3xf32>
    %1 = vector.shape_cast %0 : vector<1x16x3xf32> to vector<16x3xf32>
    %c0_2 = arith.constant 0 : index
    %c0_3 = arith.constant 0 : index
    %c0_4 = arith.constant 0 : index
    %2 = vector.load %arg3[%c0_2, %c0_3, %c0_4] : memref<1x3x16xf32, #tpu.memory_space<vmem>>, vector<1x3x16xf32>
    %3 = vector.shape_cast %2 : vector<1x3x16xf32> to vector<3x16xf32>
    %cst = arith.constant dense<0.000000e+00> : vector<16x16xf32>
    %4 = tpu.matmul %1, %3, %cst {dimension_numbers = #tpu.dot_dimension_numbers<[1], [0], [0], [1], [0, 0, 1, 1], [], []>} : vector<16x3xf32>, vector<3x16xf32>, vector<16x16xf32> -> vector<16x16xf32>
    %5 = arith.mulf %1, %1 : vector<16x3xf32>
    %cst_5 = arith.constant dense<0.000000e+00> : vector<16xf32>
    %6 = vector.multi_reduction <add>, %5, %cst_5 [1] : vector<16x3xf32> to vector<16xf32>
    %7 = vector.shape_cast %6 : vector<16xf32> to vector<16x1xf32>
    %8 = arith.mulf %3, %3 : vector<3x16xf32>
    %cst_6 = arith.constant dense<0.000000e+00> : vector<16xf32>
    %9 = vector.multi_reduction <add>, %8, %cst_6 [0] : vector<3x16xf32> to vector<16xf32>
    %10 = vector.shape_cast %9 : vector<16xf32> to vector<1x16xf32>
    %11 = vector.broadcast %7 : vector<16x1xf32> to vector<16x16xf32>
    %12 = vector.broadcast %10 : vector<1x16xf32> to vector<16x16xf32>
    %13 = arith.addf %11, %12 : vector<16x16xf32>
    %cst_7 = arith.constant 2.000000e+00 : f32
    %14 = vector.broadcast %cst_7 : f32 to vector<16x16xf32>
    %15 = arith.mulf %14, %4 : vector<16x16xf32>
    %16 = arith.subf %13, %15 : vector<16x16xf32>
    %c0_8 = arith.constant 0 : index
    %c0_9 = arith.constant 0 : index
    %c0_10 = arith.constant 0 : index
    %17 = vector.load %arg4[%c0_8, %c0_9, %c0_10] : memref<1x16x16xf32, #tpu.memory_space<vmem>>, vector<1x16x16xf32>
    %18 = vector.shape_cast %17 : vector<1x16x16xf32> to vector<16x16xf32>
    %19 = vector.shape_cast %16 : vector<16x16xf32> to vector<1x16x16xf32>
    tpu.vector_store %arg4[%c0_8, %c0_9, %c0_10], %19 {strides = array<i32>} : memref<1x16x16xf32, #tpu.memory_space<vmem>>, vector<1x16x16xf32>,
    return
  }
  func.func @transform_0(%arg0: i32, %arg1: i32) -> (i32, i32, i32) {
    %c0_i32 = arith.constant 0 : i32
    %c0_i32_0 = arith.constant 0 : i32
    return %arg0, %arg1, %c0_i32 : i32, i32, i32
  }
  func.func @transform_1(%arg0: i32, %arg1: i32) -> (i32, i32, i32) {
    %c0_i32 = arith.constant 0 : i32
    %c0_i32_0 = arith.constant 0 : i32
    %c0_i32_1 = arith.constant 0 : i32
    return %arg0, %c0_i32, %c0_i32_0 : i32, i32, i32
  }
  func.func @transform_2(%arg0: i32, %arg1: i32) -> (i32, i32, i32) {
    %c0_i32 = arith.constant 0 : i32
    %c0_i32_0 = arith.constant 0 : i32
    return %arg0, %arg1, %c0_i32 : i32, i32, i32
  }
}

</mosaic_0001>

<llo_original>
// kernel: tpu_custom_call.1
$region0: #{tpu_custom_call.1}
  #allocation0 [shape = 'u32[]', space=smem, size = 0x4, offset = 0x4, fixed_abs, tag = 'smem constant byte address 0x4 - core index']
  #allocation1 [shape = 'u32[144,128]{1,0:T(1,128)}', space=vmem, size = 0x12000, scoped, tag = 'internal scratch']
  %s0 = inlined_call_operand.vmem [shape: f32[2,16,3], index: 0, kind: input, shape index: {}]
  %s1 = inlined_call_operand.vmem [shape: f32[2,3,16], index: 1, kind: input, shape index: {}]
  %s2 = inlined_call_operand.hbm [shape: f32[2,16,16], index: 2, kind: output, shape index: {}]
  %s3 = sld [smem:[#allocation0]]
  $region41: #{tpu_custom_call.1} parent=0
    _
  %s5 = ssub.s32 1, %s3
  %s6 = scalar_select 0, %s5, %s3
  $region1: #{tpu_custom_call.1} parent=0
    #allocation2 [shape = 'u8[16384]{0}', space=vmem, size = 0x4000, scoped, tag = 'output window, operand 0']
    #allocation3 [shape = 's32[2]{0}', space=sflag, size = 0x8, scoped, tag = 'scoped memory for tpu_custom_call.1']
    %7 = vsyncpa [#allocation3], 0
    %s8 = scalar_lea.sflag [#allocation3], 1
    %9 = vsyncpa %s8, 0
    loop: start=0, step=1, limit=4
    $region2: #{tpu_custom_call.1} parent=1 // loop_pre_header
      _
    $region3: #{tpu_custom_call.1} parent=1 // loop_header
      %s11 = sphi 0, %s15
      %p12 = scmp.ge.s32.totalorder %s11, 4
      %s18 = sphi 0, %s30
      %s19 = sphi 0, %s26
      %s20 = sphi 0, %s18
      %s21 = sphi 0, %s19
      %s22 = sphi 0, %s20
      %s23 = sphi 0, %s21
      %s35 = sphi 0, %s37
      %s38 = sphi 0, %s35
      %s39 = sphi 0, %s38
      %s55 = sphi 0, %s39
      %s61 = sphi 0, %s63
      %s64 = sphi 0, %s61
      %s65 = sphi 0, %s64
      %s81 = sphi 0, %s65
      %s89 = sphi 0, %s91
      %s92 = sphi 0, %s89
      %s93 = sphi 0, %s92
      %s109 = sphi 0, %s93
    $region4: #{tpu_custom_call.1} parent=1 // loop_header_branch
      %14 = sbr.rel (%p12) target = $region8
    $region5: #{tpu_custom_call.1} parent=1 // loop_body
      %s16 = ssub.s32 %s11, 1
      %s17 = ssub.s32 %s11, 2
      %s24 = sadd.s32 1, %s19
      %p25 = scmp.ge.s32.totalorder %s24, 1
      %s26 = scalar_select %p25, 0, %s24
      %s27 = sadd.s32 1, %s18
      %s28 = scalar_select %p25, %s27, %s18
      %p29 = scmp.ge.s32.totalorder %s28, 2
      %s30 = scalar_select %p29, 0, %s28
      %s31 = ssub.s32 %s18, %s30
      %s32 = ssub.s32 %s19, %s26
      %s33 = sor.u32 %s31, %s32
      %p34 = scmp.eq.s32.totalorder %s33, 0
      %s36 = sadd.s32 %s35, 1
      %s37 = scalar_select %p34, %s35, %s36
      %p40 = pneg %p34
      %p41 = scmp.eq.s32.totalorder %s11, 1
      %p42 = por %p40, %p41
      %p43 = scmp.ne.s32.totalorder %s35, %s38
      %p44 = scmp.eq.s32.totalorder %s11, 0
      %p45 = por %p43, %p44
      %p46 = scmp.ne.s32.totalorder %s35, %s38
      %p47 = scmp.eq.s32.totalorder %s16, 1
      %p48 = por %p46, %p47
      %p49 = scmp.ne.s32.totalorder %s38, %s39
      %p50 = scmp.eq.s32.totalorder %s16, 0
      %p51 = por %p49, %p50
      %p52 = scmp.ne.s32.totalorder %s38, %s39
      %p53 = scmp.eq.s32.totalorder %s17, 1
      %p54 = por %p52, %p53
      %p56 = scmp.ne.s32.totalorder %s39, %s55
      %p57 = scmp.eq.s32.totalorder %s17, 0
      %p58 = por %p56, %p57
      %s59 = ssub.s32 %s18, %s30
      %p60 = scmp.eq.s32.totalorder %s59, 0
      %s62 = sadd.s32 %s61, 1
      %s63 = scalar_select %p60, %s61, %s62
      %p66 = pneg %p60
      %p67 = scmp.eq.s32.totalorder %s11, 1
      %p68 = por %p66, %p67
      %p69 = scmp.ne.s32.totalorder %s61, %s64
      %p70 = scmp.eq.s32.totalorder %s11, 0
      %p71 = por %p69, %p70
      %p72 = scmp.ne.s32.totalorder %s61, %s64
      %p73 = scmp.eq.s32.totalorder %s16, 1
      %p74 = por %p72, %p73
      %p75 = scmp.ne.s32.totalorder %s64, %s65
      %p76 = scmp.eq.s32.totalorder %s16, 0
      %p77 = por %p75, %p76
      %p78 = scmp.ne.s32.totalorder %s64, %s65
      %p79 = scmp.eq.s32.totalorder %s17, 1
      %p80 = por %p78, %p79
      %p82 = scmp.ne.s32.totalorder %s65, %s81
      %p83 = scmp.eq.s32.totalorder %s17, 0
      %p84 = por %p82, %p83
      %s85 = ssub.s32 %s18, %s30
      %s86 = ssub.s32 %s19, %s26
      %s87 = sor.u32 %s85, %s86
      %p88 = scmp.eq.s32.totalorder %s87, 0
      %s90 = sadd.s32 %s89, 1
      %s91 = scalar_select %p88, %s89, %s90
      %p94 = pneg %p88
      %p95 = scmp.eq.s32.totalorder %s11, 1
      %p96 = por %p94, %p95
      %p97 = scmp.ne.s32.totalorder %s89, %s92
      %p98 = scmp.eq.s32.totalorder %s11, 0
      %p99 = por %p97, %p98
      %p100 = scmp.ne.s32.totalorder %s89, %s92
      %p101 = scmp.eq.s32.totalorder %s16, 1
      %p102 = por %p100, %p101
      %p103 = scmp.ne.s32.totalorder %s92, %s93
      %p104 = scmp.eq.s32.totalorder %s16, 0
      %p105 = por %p103, %p104
      %p106 = scmp.ne.s32.totalorder %s92, %s93
      %p107 = scmp.eq.s32.totalorder %s17, 1
      %p108 = por %p106, %p107
      %p110 = scmp.ne.s32.totalorder %s93, %s109
      %p111 = scmp.eq.s32.totalorder %s17, 0
      %p112 = por %p110, %p111
      %p113 = scmp.le.s32.totalorder 1, %s11
      %p114 = scmp.lt.s32.totalorder %s11, 3
      %p115 = pnand %p113, %p114
      %p116 = pneg %p115
      // Predicated region
      $region9: #{tpu_custom_call.1} parent=5 // pred_check
        _
      $region10: #{tpu_custom_call.1} parent=5 // pred_check_branch
        %118 = sbr.rel (%p115) target = $region12
      $region11: #{tpu_custom_call.1} parent=5 // pred_region
        %s119 = ssub.s32 %s11, 1
      $region12: #{tpu_custom_call.1} parent=5 // pred_fallthru
        _
      %p120 = scmp.lt.s32.totalorder %s11, 2
      // Predicated region
      $region13: #{tpu_custom_call.1} parent=5 // pred_check
        %p121 = pneg %p120
      $region14: #{tpu_custom_call.1} parent=5 // pred_check_branch
        %123 = sbr.rel (%p121) target = $region16
      $region15: #{tpu_custom_call.1} parent=5 // pred_region
        // Predicated region
        $region17: #{tpu_custom_call.1} parent=15 // pred_check
          %p124 = pneg %p45
        $region18: #{tpu_custom_call.1} parent=15 // pred_check_branch
          %126 = sbr.rel (%p124) target = $region20
        $region19: #{tpu_custom_call.1} parent=15 // pred_region
          %s127 = smul.u32 2, %s19
          %p128 = scmp.lt.s32.totalorder %s18, 1
          %s129 = scalar_select %p128, %s18, 1
          %p130 = scmp.lt.s32.totalorder %s127, 1
          %s131 = scalar_select %p130, %s127, 1
          %s132 = smul.addr %s129, 2
          %s133 = sadd.s32 %s131, %s132
          %s134 = smul.addr %s133, 8
          %s135 = scalar_lea.vmem %s0, %s134
          %s136 = smul.u32 2, %s19
        $region20: #{tpu_custom_call.1} parent=15 // pred_fallthru
          _
        // Predicated region
        $region21: #{tpu_custom_call.1} parent=15 // pred_check
          %p137 = pneg %p71
        $region22: #{tpu_custom_call.1} parent=15 // pred_check_branch
          %139 = sbr.rel (%p137) target = $region24
        $region23: #{tpu_custom_call.1} parent=15 // pred_region
          %p140 = scmp.lt.s32.totalorder %s18, 1
          %s141 = scalar_select %p140, %s18, 1
          %s142 = smul.addr %s141, 4
          %s143 = scalar_lea.vmem %s1, %s142
        $region24: #{tpu_custom_call.1} parent=15 // pred_fallthru
          _
      $region16: #{tpu_custom_call.1} parent=5 // pred_fallthru
        _
      %p144 = scmp.le.s32.totalorder 1, %s11
      %p145 = scmp.lt.s32.totalorder %s11, 3
      %p146 = pnand %p144, %p145
      %p147 = pneg %p146
      // Predicated region
      $region25: #{tpu_custom_call.1} parent=5 // pred_check
        _
      $region26: #{tpu_custom_call.1} parent=5 // pred_check_branch
        %149 = sbr.rel (%p146) target = $region28
      $region27: #{tpu_custom_call.1} parent=5 // pred_region
        %s150 = ssub.s32 %s11, 1
        %s151 = smul.u32 2, %s21
        %p152 = scmp.lt.s32.totalorder %s20, 1
        %s153 = scalar_select %p152, %s20, 1
        %p154 = scmp.lt.s32.totalorder %s151, 1
        %s155 = scalar_select %p154, %s151, 1
        %s156 = smul.addr %s153, 2
        %s157 = sadd.s32 %s155, %s156
        %s158 = smul.addr %s157, 8
        %s159 = scalar_lea.vmem %s0, %s158
        %p160 = pneg %p51
        %p161 = pneg %p48
        %p162 = scmp.lt.s32.totalorder %s20, 1
        %s163 = scalar_select %p162, %s20, 1
        %s164 = smul.addr %s163, 4
        %s165 = scalar_lea.vmem %s1, %s164
        %p166 = pneg %p77
        %p167 = pneg %p74
        %p168 = pneg %p105
        %p169 = pneg %p102
        %s170 = sand.u32 %s92, 1
        %s171 = scalar_lea.sflag [#allocation3], %s170
        %s172 = sand.u32 %s92, 1
        %s173 = smul.addr %s172, 16
        %s174 = scalar_lea.vmem [#allocation2], %s173
        %s175 = smul.u32 2, %s21
        %p176 = scmp.lt.s32.totalorder %s20, 1
        %s177 = scalar_select %p176, %s20, 1
        %p178 = scmp.lt.s32.totalorder %s175, 1
        %s179 = scalar_select %p178, %s175, 1
        %s180 = smul.addr %s177, 2
        %s181 = sadd.s32 %s179, %s180
        %s182 = smul.addr %s181, 8
        %s183 = scalar_lea.vmem %s0, %s182
        %s184 = smul.u32 2, %s21
        %p185 = scmp.lt.s32.totalorder %s20, 1
        %s186 = scalar_select %p185, %s20, 1
        %s187 = smul.addr %s186, 4
        %s188 = scalar_lea.vmem %s1, %s187
        %s189 = smul.u32 2, %s21
        %v190 = vld [vmem:[%s183] sm:$0xff]
        %v191 = vld [vmem:[%s183 + $0x8] sm:$0xff]
        %v192 = vld [vmem:[%s188] sm:$0x7]
        %vm193 = vcmask 23552
        %v195 = vsel %vm193, %v190, 0
        %v198 = vsel %vm193, %v191, 0
        %vm200 = vcmask 1042432
        %v202 = vsel %vm200, %v192, 0
        %204 = vmatprep.subr.mxu0 0.0
        %205 = vmatpush1.msra.mxu0 %v202
        %206 = vmatprep.subr.mxu0 0.0
        %207 = vmatpush1.msra.mxu0 0.0
        %208 = vmatprep.subr.mxu0 0.0
        %209 = vmatpush1.msra.mxu0 0.0
        %210 = vmatprep.subr.mxu0 0.0
        %211 = vmatpush1.msra.mxu0 0.0
        %212 = vmatprep.subr.mxu0 0.0
        %213 = vmatpush1.msra.mxu0 0.0
        %214 = vmatprep.subr.mxu0 0.0
        %215 = vmatpush1.msra.mxu0 0.0
        %216 = vmatprep.subr.mxu0 0.0
        %217 = vmatpush1.msra.mxu0 0.0
        %218 = vmatprep.subr.mxu0 0.0
        %219 = vmatpush1.msra.mxu0 0.0
        %220 = vmatprep.subr.mxu0 0.0
        %221 = vmatpush1.msra.mxu0 0.0
        %222 = vmatprep.subr.mxu0 0.0
        %223 = vmatpush1.msra.mxu0 0.0
        %224 = vmatprep.subr.mxu0 0.0
        %225 = vmatpush1.msra.mxu0 0.0
        %226 = vmatprep.subr.mxu0 0.0
        %227 = vmatpush1.msra.mxu0 0.0
        %228 = vmatprep.subr.mxu0 0.0
        %229 = vmatpush1.msra.mxu0 0.0
        %230 = vmatprep.subr.mxu0 0.0
        %231 = vmatpush1.msra.mxu0 0.0
        %232 = vmatprep.subr.mxu0 0.0
        %233 = vmatpush1.msra.mxu0 0.0
        %234 = vmatprep.subr.mxu0 0.0
        %235 = vmatpush1.msra.mxu0 0.0
        %236 = vmatprep.subr.mxu0 0.0
        %237 = vmatpush1.msra.mxu0 0.0
        %238 = vmatprep.subr.mxu0 0.0
        %239 = vmatpush1.msra.mxu0 0.0
        %240 = vmatprep.subr.mxu0 0.0
        %241 = vmatpush1.msra.mxu0 0.0
        %242 = vmatprep.subr.mxu0 0.0
        %243 = vmatpush1.msra.mxu0 0.0
        %244 = vmatprep.subr.mxu0 0.0
        %245 = vmatpush1.msra.mxu0 0.0
        %246 = vmatprep.subr.mxu0 0.0
        %247 = vmatpush1.msra.mxu0 0.0
        %248 = vmatprep.subr.mxu0 0.0
        %249 = vmatpush1.msra.mxu0 0.0
        %250 = vmatprep.subr.mxu0 0.0
        %251 = vmatpush1.msra.mxu0 0.0
        %252 = vmatprep.subr.mxu0 0.0
        %253 = vmatpush1.msra.mxu0 0.0
        %254 = vmatprep.subr.mxu0 0.0
        %255 = vmatpush1.msra.mxu0 0.0
        %256 = vmatprep.subr.mxu0 0.0
        %257 = vmatpush1.msra.mxu0 0.0
        %258 = vmatprep.subr.mxu0 0.0
        %259 = vmatpush1.msra.mxu0 0.0
        %260 = vmatprep.subr.mxu0 0.0
        %261 = vmatpush1.msra.mxu0 0.0
        %262 = vmatprep.subr.mxu0 0.0
        %263 = vmatpush1.msra.mxu0 0.0
        %264 = vmatprep.subr.mxu0 0.0
        %265 = vmatpush1.msra.mxu0 0.0
        %266 = vmatprep.subr.mxu0 0.0
        %267 = vmatpush1.msra.mxu0 0.0
        %268 = vmatprep.mubr.f32.mxu0 0.0
        %269 = vmatmul.mubr.f32.gmra.mrb[0].mxu0 %v195
        %v270 = vpop.f32.mrb[0].mxu0
        %v271 = vadd.f32 0.0, %v270
        %v272 = vpop.f32.mrb[0].mxu0
        %273 = vmatprep.mubr.f32.mxu0 0.0
        %274 = vmatmul.mubr.f32.gmra.mrb[0].mxu0 %v198
        %v275 = vpop.f32.mrb[0].mxu0
        %v276 = vadd.f32 0.0, %v275
        %v277 = vpop.f32.mrb[0].mxu0
        %278 = vdwg.mxu0
        %v279 = vmul.f32 %v190, %v190
        %v280 = vmul.f32 %v191, %v191
        %v281 = vsel %vm193, %v279, 0.0
        %282 = vadd.xlane.f32.xlu0 %v281
        %v283 = vpop.xlane.xlu0 %282
        %v284 = vsel %vm193, %v280, 0.0
        %285 = vadd.xlane.f32.xlu0 %v284
        %v286 = vpop.xlane.xlu0 %285
        %v287 = vmul.f32 %v192, %v192
        %vm288 = vcmask 124928
        %v289 = vsel %vm288, %v287, 0.0
        %v290 = vrot.slane %v289, 4
        %v291 = vadd.f32 %v289, %v290
        %v292 = vrot.slane %v291, 2
        %v293 = vadd.f32 %v291, %v292
        %v294 = vrot.slane %v293, 1
        %v295 = vadd.f32 %v293, %v294
        %v296 = vadd.f32 %v283, %v295
        %v297 = vadd.f32 %v286, %v295
        %v298 = vmul.f32 %v271, 2.0
        %v299 = vmul.f32 %v276, 2.0
        %v300 = vsub.f32 %v296, %v298
        %v301 = vsub.f32 %v297, %v299
        %vm302 = vcmask 130048
        %303 = vst.msk [vmem:[%s174] sm:$0xff] %vm302, %v300
        %304 = vst.msk [vmem:[%s174 + $0x8] sm:$0xff] %vm302, %v301
        %s305 = sand.u32 %s92, 1
        %s306 = scalar_lea.sflag [#allocation3], %s305
        %s307 = sand.u32 %s92, 1
        %s308 = smul.addr %s307, 16
        %s309 = scalar_lea.vmem [#allocation2], %s308
        // Predicated region
        $region29: #{tpu_custom_call.1} parent=27 // pred_check
          %p310 = pneg %p102
        $region30: #{tpu_custom_call.1} parent=27 // pred_check_branch
          %312 = sbr.rel (%p310) target = $region32
        $region31: #{tpu_custom_call.1} parent=27 // pred_region
          %s313 = smul.u32 2, %s21
          %s315 = ssub.s32 256, 256
          %316 = vsyncadd %s306, %s315
          %s317 = smul.addr %s20, 2
          %s318 = sadd.s32 %s313, %s317
          %s319 = smul.addr %s318, 128
          %s320 = scalar_lea.hbm %s2, %s319
          %s321 = sshll.u32 %s309, 4
          %s322 = int_to_ptr.vmem [resolvable:$true] %s321
          %327 = dma.vmem_to_hbm [thread:$0]  %s322, 256, %s320, %s306, 128, 128, 8
        $region32: #{tpu_custom_call.1} parent=27 // pred_fallthru
          _
      $region28: #{tpu_custom_call.1} parent=5 // pred_fallthru
        _
      %p328 = scmp.le.s32.totalorder 2, %s11
      // Predicated region
      $region33: #{tpu_custom_call.1} parent=5 // pred_check
        %p329 = pneg %p328
      $region34: #{tpu_custom_call.1} parent=5 // pred_check_branch
        %331 = sbr.rel (%p329) target = $region36
      $region35: #{tpu_custom_call.1} parent=5 // pred_region
        %s332 = ssub.s32 %s11, 2
        // Predicated region
        $region37: #{tpu_custom_call.1} parent=35 // pred_check
          %p333 = pneg %p108
        $region38: #{tpu_custom_call.1} parent=35 // pred_check_branch
          %335 = sbr.rel (%p333) target = $region40
        $region39: #{tpu_custom_call.1} parent=35 // pred_region
          %s336 = sand.u32 %s93, 1
          %s337 = scalar_lea.sflag [#allocation3], %s336
          %s338 = sand.u32 %s93, 1
          %s339 = smul.addr %s338, 16
          %s340 = scalar_lea.vmem [#allocation2], %s339
          %341 = dma.done %s337, 256
        $region40: #{tpu_custom_call.1} parent=35 // pred_fallthru
          _
      $region36: #{tpu_custom_call.1} parent=5 // pred_fallthru
        _
    $region6: #{tpu_custom_call.1} parent=1 // loop_footer
      %s15 = sadd.s32 1, %s11
    $region7: #{tpu_custom_call.1} parent=1 // loop_footer_branch
      %10 = sbr.rel target = $region3
    $region8: #{tpu_custom_call.1} parent=1 // loop_exit
      _
    %342 = vsyncpa [#allocation3], 1
    %s343 = scalar_lea.sflag [#allocation3], 1
    %344 = vsyncpa %s343, 1

</llo_original>
